<compile_context>
chip_gen: v5e
topology: v5e:2x2
jax: 0.10.0
libtpu: 0.0.40
codegen_flags: <defaults>
</compile_context>

<pallas_src>
import math
import functools

import jax
import jax.numpy as jnp
from jax.experimental import pallas as pl
from jax.experimental.pallas import tpu as pltpu

MAX_COUNT_INT = 255
NUM_EXTRA_EMBEDDINGS = 1
MIN_TOKENS_FOR_KERNEL = 2048          # below this, plain jnp.take wins (unless forced)


def _round_up(x, m):
    return ((x + m - 1) // m) * m


def _int_embed_kernel(gidx_ref, t_hi_ref, t_lo_ref, out_ref):
    """One grid step: TILE_ROWS packed rows (G tokens each).

    gidx_ref : (TILE_ROWS, G) int32, gidx[r, g] = g*V + clamp(idx[r*G + g])
    t_hi_ref : (G*V, G*D) bf16   block-diagonal table, high bf16 half
    t_lo_ref : (G*V, G*D) bf16   block-diagonal table, low  bf16 half (residual)
    out_ref  : (TILE_ROWS, G*D) f32
    """
    gidx = gidx_ref[...]                                    # (TR, G)
    tr, g_count = gidx.shape
    gv = t_hi_ref.shape[0]                                  # G * V

    # Block-diagonal one-hot: hit[r, c] = (c == g*V + idx[r, g]) for some g.
    # Group value ranges are disjoint, so an OR over per-group broadcasts is an
    # exact one-hot.  Each compare is a cheap per-row lane-broadcast (VPU),
    # no cross-lane relayout.
    col = jax.lax.broadcasted_iota(jnp.int32, (tr, gv), 1)  # (TR, G*V)
    hit = col == gidx[:, 0:1]
    for g in range(1, g_count):                             # g_count is static (<= 4)
        hit = jnp.logical_or(hit, col == gidx[:, g:g + 1])
    onehot = hit.astype(jnp.bfloat16)                       # exact 0.0 / 1.0

    # bf16 MXU matmuls, f32 accumulation.  hi + lo reconstructs the f32 table
    # row (one nonzero product per output element per half -> exact gather of
    # the hi/lo halves).
    acc = jnp.dot(onehot, t_hi_ref[...], preferred_element_type=jnp.float32)
    acc = acc + jnp.dot(onehot, t_lo_ref[...], preferred_element_type=jnp.float32)
    out_ref[...] = acc


def make_int_featurizer(int_to_feat_matrix, extra_embeddings, *, max_tile_tokens=2048):
    """Build the forward fn; all table preprocessing is done once here (init time)."""
    d = int(int_to_feat_matrix.shape[1])
    v = MAX_COUNT_INT + NUM_EXTRA_EMBEDDINGS                # 256 rows total

    # Concatenated lookup table: rows 0..254 = int features, row 255.. = extras.
    table_f32 = jnp.concatenate(
        [int_to_feat_matrix.astype(jnp.float32),
         extra_embeddings.astype(jnp.float32)], axis=0)     # (V, D)

    # Lane-packing factor: G tokens per output row so the output row is 128
    # lanes wide (unmasked stores).  Falls back to 1 if D doesn't divide 128.
    if d < 128 and 128 % d == 0:
        g = 128 // d
    else:
        g = 1

    # Block-diagonal table (G*V, G*D): row g*V + val carries table[val] in the
    # column block [g*D, (g+1)*D).  Built once; split into bf16 hi/lo halves.
    eye = jnp.eye(g, dtype=jnp.float32)                     # (G, G)
    t_bd = jnp.einsum("gh,vd->gvhd", eye, table_f32).reshape(g * v, g * d)
    t_hi = t_bd.astype(jnp.bfloat16)
    t_lo = (t_bd - t_hi.astype(jnp.float32)).astype(jnp.bfloat16)

    default_tile_rows = max(8, _round_up(max(1, max_tile_tokens // g), 8))

    def _forward(tensor, *, force_kernel=False):
        orig_shape = tensor.shape
        n = math.prod(orig_shape)
        new_shape = tuple(orig_shape[:-1]) + (orig_shape[-1] * d,)
        if n == 0:
            return jnp.zeros(new_shape, jnp.float32)

        # Clamp indices into the 256-row table (PyTorch would OOB on invalid
        # indices; anything >= 255 maps to the pad/extra embedding here).
        idx = jnp.clip(tensor.reshape(-1).astype(jnp.int32), 0, v - 1)

        if (not force_kernel) and n < MIN_TOKENS_FOR_KERNEL:
            # Tiny-input bypass: XLA's native gather beats pallas_call overhead.
            return jnp.take(table_f32, idx, axis=0).reshape(new_shape)

        # Tile the token axis: rows of G packed tokens, multiple of 8 sublanes.
        rows_needed = -(-n // g)
        tile_rows = min(default_tile_rows, _round_up(rows_needed, 8))
        num_tiles = -(-rows_needed // tile_rows)
        rows_pad = num_tiles * tile_rows
        n_pad = rows_pad * g

        idx_p = jnp.pad(idx, (0, n_pad - n))                # pad index 0 (valid row)
        gidx = (idx_p.reshape(rows_pad, g)
                + (jnp.arange(g, dtype=jnp.int32) * v)[None, :])   # (rows_pad, G)

        out = pl.pallas_call(
            _int_embed_kernel,
            out_shape=jax.ShapeDtypeStruct((rows_pad, g * d), jnp.float32),
            grid=(num_tiles,),
            in_specs=[
                pl.BlockSpec((tile_rows, g), lambda i: (i, 0)),
                pl.BlockSpec((g * v, g * d), lambda i: (0, 0)),   # resident table (hi)
                pl.BlockSpec((g * v, g * d), lambda i: (0, 0)),   # resident table (lo)
            ],
            out_specs=pl.BlockSpec((tile_rows, g * d), lambda i: (i, 0)),
            compiler_params=pltpu.CompilerParams(
                dimension_semantics=("parallel",)),
        )(gidx, t_hi, t_lo)

        # (rows_pad, G*D) row-major == token-major (D per token): free reshape.
        return out.reshape(-1)[: n * d].reshape(new_shape)

    return jax.jit(_forward, static_argnames=("force_kernel",))


if __name__ == "__main__":
    key = jax.random.PRNGKey(0)
    k_feat, k_extra, k1, k2 = jax.random.split(key, 4)

    embedding_dim = 32

    # Deterministic synthetic parameters (shapes per __init__ / subclass contract).
    int_to_feat_matrix = jax.random.normal(
        k_feat, (MAX_COUNT_INT, embedding_dim), dtype=jnp.float32)
    extra_embeddings = jax.random.normal(
        k_extra, (NUM_EXTRA_EMBEDDINGS, embedding_dim), dtype=jnp.float32)

    table_ref = jnp.concatenate([int_to_feat_matrix, extra_embeddings], axis=0)

    # --- Case 1: small integer input, single tile, includes pad tokens (255).
    forward = make_int_featurizer(int_to_feat_matrix, extra_embeddings)
    x = jax.random.randint(k1, (2, 8, 4), 0, MAX_COUNT_INT, dtype=jnp.int32)
    x = x.at[0, 0, 0].set(MAX_COUNT_INT)
    x = x.at[1, 3, 2].set(MAX_COUNT_INT)

    out = jax.block_until_ready(forward(x, force_kernel=True))
    ref = jnp.take(table_ref, x.reshape(-1), axis=0).reshape(
        2, 8, 4 * embedding_dim)
    assert out.shape == (2, 8, 4 * embedding_dim), out.shape
    assert out.dtype == jnp.float32
    assert jnp.allclose(out, ref, atol=1e-5, rtol=2e-4), float(
        jnp.max(jnp.abs(out - ref)))

    # --- Case 2: force multiple grid steps (small tile) to exercise the
    # tiled, parallel, pipelined path; values span the full table incl. 255.
    forward_tiled = make_int_featurizer(
        int_to_feat_matrix, extra_embeddings, max_tile_tokens=64)
    x2 = jax.random.randint(
        k2, (4, 16, 8), 0, MAX_COUNT_INT + NUM_EXTRA_EMBEDDINGS, dtype=jnp.int32)
    out2 = jax.block_until_ready(forward_tiled(x2, force_kernel=True))
    ref2 = jnp.take(table_ref, x2.reshape(-1), axis=0).reshape(
        4, 16, 8 * embedding_dim)
    assert out2.shape == (4, 16, 8 * embedding_dim)
    assert jnp.allclose(out2, ref2, atol=1e-5, rtol=2e-4), float(
        jnp.max(jnp.abs(out2 - ref2)))

    print("KERNEL_OK")
</pallas_src>

<mosaic_0001>
module attributes {stable_mosaic.version = 11 : i64} {
  func.func @_int_embed_kernel(%arg0: i32, %arg1: memref<16x4xi32, #tpu.memory_space<vmem>>, %arg2: memref<1024x128xbf16, #tpu.memory_space<vmem>>, %arg3: memref<1024x128xbf16, #tpu.memory_space<vmem>>, %arg4: memref<16x128xf32, #tpu.memory_space<vmem>>) attributes {dimension_semantics = [#tpu.dimension_semantics<parallel>], iteration_bounds = array<i64: 1>, scalar_prefetch = 0 : i64, scratch_operands = 0 : i64, tpu.core_type = #tpu.core_type<tc>, window_params = [{transform_indices = @transform_0, window_bounds = array<i64: 16, 4>}, {pipeline_mode = #tpu.pipeline_mode<synchronous>, transform_indices = @transform_1, window_bounds = array<i64: 1024, 128>}, {pipeline_mode = #tpu.pipeline_mode<synchronous>, transform_indices = @transform_2, window_bounds = array<i64: 1024, 128>}, {transform_indices = @transform_3, window_bounds = array<i64: 16, 128>}]} {
    %c0 = arith.constant 0 : index
    %c0_0 = arith.constant 0 : index
    %0 = vector.load %arg1[%c0, %c0_0] : memref<16x4xi32, #tpu.memory_space<vmem>>, vector<16x4xi32>
    %1 = tpu.iota {dimensions = array<i32: 1>} : vector<16x1024xi32>
    %2 = vector.extract_strided_slice %0 {offsets = [0, 0], sizes = [16, 1], strides = [1, 1]} : vector<16x4xi32> to vector<16x1xi32>
    %3 = vector.broadcast %2 : vector<16x1xi32> to vector<16x1024xi32>
    %4 = arith.cmpi eq, %1, %3 : vector<16x1024xi32>
    %5 = vector.extract_strided_slice %0 {offsets = [0, 1], sizes = [16, 1], strides = [1, 1]} : vector<16x4xi32> to vector<16x1xi32>
    %6 = vector.broadcast %5 : vector<16x1xi32> to vector<16x1024xi32>
    %7 = arith.cmpi eq, %1, %6 : vector<16x1024xi32>
    %8 = arith.ori %4, %7 : vector<16x1024xi1>
    %9 = vector.extract_strided_slice %0 {offsets = [0, 2], sizes = [16, 1], strides = [1, 1]} : vector<16x4xi32> to vector<16x1xi32>
    %10 = vector.broadcast %9 : vector<16x1xi32> to vector<16x1024xi32>
    %11 = arith.cmpi eq, %1, %10 : vector<16x1024xi32>
    %12 = arith.ori %8, %11 : vector<16x1024xi1>
    %13 = vector.extract_strided_slice %0 {offsets = [0, 3], sizes = [16, 1], strides = [1, 1]} : vector<16x4xi32> to vector<16x1xi32>
    %14 = vector.broadcast %13 : vector<16x1xi32> to vector<16x1024xi32>
    %15 = arith.cmpi eq, %1, %14 : vector<16x1024xi32>
    %16 = arith.ori %12, %15 : vector<16x1024xi1>
    %17 = arith.extui %16 : vector<16x1024xi1> to vector<16x1024xi32>
    %18 = arith.sitofp %17 : vector<16x1024xi32> to vector<16x1024xf32>
    %19 = arith.truncf %18 : vector<16x1024xf32> to vector<16x1024xbf16>
    %c0_1 = arith.constant 0 : index
    %c0_2 = arith.constant 0 : index
    %20 = vector.load %arg2[%c0_1, %c0_2] : memref<1024x128xbf16, #tpu.memory_space<vmem>>, vector<1024x128xbf16>
    %cst = arith.constant dense<0.000000e+00> : vector<16x128xf32>
    %21 = tpu.matmul %19, %20, %cst {dimension_numbers = #tpu.dot_dimension_numbers<[1], [0], [0], [1], [0, 0, 1, 1], [], []>} : vector<16x1024xbf16>, vector<1024x128xbf16>, vector<16x128xf32> -> vector<16x128xf32>
    %c0_3 = arith.constant 0 : index
    %c0_4 = arith.constant 0 : index
    %22 = vector.load %arg3[%c0_3, %c0_4] : memref<1024x128xbf16, #tpu.memory_space<vmem>>, vector<1024x128xbf16>
    %cst_5 = arith.constant dense<0.000000e+00> : vector<16x128xf32>
    %23 = tpu.matmul %19, %22, %cst_5 {dimension_numbers = #tpu.dot_dimension_numbers<[1], [0], [0], [1], [0, 0, 1, 1], [], []>} : vector<16x1024xbf16>, vector<1024x128xbf16>, vector<16x128xf32> -> vector<16x128xf32>
    %24 = arith.addf %21, %23 : vector<16x128xf32>
    %c0_6 = arith.constant 0 : index
    %c0_7 = arith.constant 0 : index
    %25 = vector.load %arg4[%c0_6, %c0_7] : memref<16x128xf32, #tpu.memory_space<vmem>>, vector<16x128xf32>
    tpu.vector_store %arg4[%c0_6, %c0_7], %24 {strides = array<i32>} : memref<16x128xf32, #tpu.memory_space<vmem>>, vector<16x128xf32>,
    return
  }
  func.func @transform_0(%arg0: i32) -> (i32, i32) {
    %c0_i32 = arith.constant 0 : i32
    %c0_i32_0 = arith.constant 0 : i32
    return %arg0, %c0_i32 : i32, i32
  }
  func.func @transform_1(%arg0: i32) -> (i32, i32) {
    %c0_i32 = arith.constant 0 : i32
    %c0_i32_0 = arith.constant 0 : i32
    %c0_i32_1 = arith.constant 0 : i32
    return %c0_i32, %c0_i32_0 : i32, i32
  }
  func.func @transform_2(%arg0: i32) -> (i32, i32) {
    %c0_i32 = arith.constant 0 : i32
    %c0_i32_0 = arith.constant 0 : i32
    %c0_i32_1 = arith.constant 0 : i32
    return %c0_i32, %c0_i32_0 : i32, i32
  }
  func.func @transform_3(%arg0: i32) -> (i32, i32) {
    %c0_i32 = arith.constant 0 : i32
    %c0_i32_0 = arith.constant 0 : i32
    return %arg0, %c0_i32 : i32, i32
  }
}

</mosaic_0001>

<llo_original>
// kernel: _forward.1
$region0: #{_forward.1}
  #allocation0 [shape = 'u32[]', space=smem, size = 0x4, offset = 0x4, fixed_abs, tag = 'smem constant byte address 0x4 - core index']
  #allocation1 [shape = 'u32[72,128]{1,0:T(1,128)}', space=vmem, size = 0x9000, scoped, tag = 'internal scratch']
  %s0 = inlined_call_operand.vmem [shape: s32[16,4], index: 0, kind: input, shape index: {}]
  %s1 = inlined_call_operand.hbm [shape: bf16[1024,128], index: 1, kind: input, shape index: {}]
  %s2 = inlined_call_operand.hbm [shape: bf16[1024,128], index: 2, kind: input, shape index: {}]
  %s3 = inlined_call_operand.hbm [shape: f32[16,128], index: 3, kind: output, shape index: {}]
  %s4 = sld [smem:[#allocation0]]
  $region30: #{_forward.1} parent=0
    _
  %s6 = ssub.s32 1, %s4
  %s7 = scalar_select 0, %s6, %s4
  $region1: #{_forward.1} parent=0
    #allocation2 [shape = 'u8[262144]{0}', space=vmem, size = 0x40000, scoped, tag = 'input window, operand 1, single buffered']
    #allocation3 [shape = 's32[1]{0}', space=sflag, size = 0x4, scoped, tag = 'scoped memory for _forward.1']
    #allocation4 [shape = 's32[1]{0}', space=sflag, size = 0x4, scoped, tag = 'scoped memory for _forward.1']
    #allocation5 [shape = 'u8[262144]{0}', space=vmem, size = 0x40000, scoped, tag = 'input window, operand 2, single buffered']
    #allocation6 [shape = 's32[1]{0}', space=sflag, size = 0x4, scoped, tag = 'scoped memory for _forward.1']
    #allocation7 [shape = 'u8[8192]{0}', space=vmem, size = 0x2000, scoped, tag = 'output window, operand 0, single buffered']
    %8 = vsyncpa [#allocation3], 0
    %9 = vsyncpa [#allocation6], 0
    %10 = vsyncpa [#allocation4], 0
    // Predicated region
    $region2: #{_forward.1} parent=1 // pred_check
      _
    $region3: #{_forward.1} parent=1 // pred_check_branch
      %12 = sbr.rel (0) target = $region5
    $region4: #{_forward.1} parent=1 // pred_region
      _
    $region5: #{_forward.1} parent=1 // pred_fallthru
      _
    // Predicated region
    $region6: #{_forward.1} parent=1 // pred_check
      _
    $region7: #{_forward.1} parent=1 // pred_check_branch
      %14 = sbr.rel (0) target = $region9
    $region8: #{_forward.1} parent=1 // pred_region
      %16 = vsyncadd [#allocation3], 0
      %s17 = sshll.u32 %s1, 4
      %s18 = int_to_ptr.hbm [resolvable:$true] %s17
      %s19 = sshll.u32 [#allocation2], 4
      %s20 = int_to_ptr.vmem [resolvable:$true] %s19
      %25 = dma.hbm_to_vmem [thread:$0]  %s18, 8192, %s20, [#allocation3], 64, 64, 4
    $region9: #{_forward.1} parent=1 // pred_fallthru
      _
    // Predicated region
    $region10: #{_forward.1} parent=1 // pred_check
      _
    $region11: #{_forward.1} parent=1 // pred_check_branch
      %27 = sbr.rel (0) target = $region13
    $region12: #{_forward.1} parent=1 // pred_region
      %29 = vsyncadd [#allocation6], 0
      %s30 = sshll.u32 %s2, 4
      %s31 = int_to_ptr.hbm [resolvable:$true] %s30
      %s32 = sshll.u32 [#allocation5], 4
      %s33 = int_to_ptr.vmem [resolvable:$true] %s32
      %38 = dma.hbm_to_vmem [thread:$0]  %s31, 8192, %s33, [#allocation6], 64, 64, 4
    $region13: #{_forward.1} parent=1 // pred_fallthru
      _
    // Predicated region
    $region14: #{_forward.1} parent=1 // pred_check
      _
    $region15: #{_forward.1} parent=1 // pred_check_branch
      %40 = sbr.rel (0) target = $region17
    $region16: #{_forward.1} parent=1 // pred_region
      %42 = dma.done [#allocation3], 8192
    $region17: #{_forward.1} parent=1 // pred_fallthru
      _
    // Predicated region
    $region18: #{_forward.1} parent=1 // pred_check
      _
    $region19: #{_forward.1} parent=1 // pred_check_branch
      %44 = sbr.rel (0) target = $region21
    $region20: #{_forward.1} parent=1 // pred_region
      %46 = dma.done [#allocation6], 8192
    $region21: #{_forward.1} parent=1 // pred_fallthru
      _
    %v47 = vld [vmem:[%s0] sm:$0xff]
    %v48 = vld [vmem:[%s0 + $0x8] sm:$0xff]
    %v49 = vlaneseq
    %v50 = vand.u32 %v49, 127
    %v51 = vadd.s32 %v50, 128
    %v52 = vadd.s32 %v50, 256
    %v53 = vadd.s32 %v50, 384
    %v54 = vadd.s32 %v50, 512
    %v55 = vadd.s32 %v50, 640
    %v56 = vadd.s32 %v50, 768
    %v57 = vadd.s32 %v50, 896
    %58 = vset.pattern.permute.xlu0 0
    %59 = vperm.xlu0 %58, %v47
    %v60 = vpop.permute.xlu0 %59
    %61 = vset.pattern.permute.xlu0 0
    %62 = vperm.xlu0 %61, %v48
    %v63 = vpop.permute.xlu0 %62
    %vm64 = vcmp.eq.s32.totalorder %v50, %v60
    %vm65 = vcmp.eq.s32.totalorder %v51, %v60
    %vm66 = vcmp.eq.s32.totalorder %v52, %v60
    %vm67 = vcmp.eq.s32.totalorder %v53, %v60
    %vm68 = vcmp.eq.s32.totalorder %v54, %v60
    %vm69 = vcmp.eq.s32.totalorder %v55, %v60
    %vm70 = vcmp.eq.s32.totalorder %v56, %v60
    %vm71 = vcmp.eq.s32.totalorder %v57, %v60
    %vm72 = vcmp.eq.s32.totalorder %v50, %v63
    %vm73 = vcmp.eq.s32.totalorder %v51, %v63
    %vm74 = vcmp.eq.s32.totalorder %v52, %v63
    %vm75 = vcmp.eq.s32.totalorder %v53, %v63
    %vm76 = vcmp.eq.s32.totalorder %v54, %v63
    %vm77 = vcmp.eq.s32.totalorder %v55, %v63
    %vm78 = vcmp.eq.s32.totalorder %v56, %v63
    %vm79 = vcmp.eq.s32.totalorder %v57, %v63
    %80 = vset.pattern.permute.xlu0 1
    %81 = vperm.xlu0 %80, %v47
    %v82 = vpop.permute.xlu0 %81
    %83 = vset.pattern.permute.xlu0 1
    %84 = vperm.xlu0 %83, %v48
    %v85 = vpop.permute.xlu0 %84
    %vm86 = vcmp.eq.s32.totalorder %v50, %v82
    %vm87 = vcmp.eq.s32.totalorder %v51, %v82
    %vm88 = vcmp.eq.s32.totalorder %v52, %v82
    %vm89 = vcmp.eq.s32.totalorder %v53, %v82
    %vm90 = vcmp.eq.s32.totalorder %v54, %v82
    %vm91 = vcmp.eq.s32.totalorder %v55, %v82
    %vm92 = vcmp.eq.s32.totalorder %v56, %v82
    %vm93 = vcmp.eq.s32.totalorder %v57, %v82
    %vm94 = vcmp.eq.s32.totalorder %v50, %v85
    %vm95 = vcmp.eq.s32.totalorder %v51, %v85
    %vm96 = vcmp.eq.s32.totalorder %v52, %v85
    %vm97 = vcmp.eq.s32.totalorder %v53, %v85
    %vm98 = vcmp.eq.s32.totalorder %v54, %v85
    %vm99 = vcmp.eq.s32.totalorder %v55, %v85
    %vm100 = vcmp.eq.s32.totalorder %v56, %v85
    %vm101 = vcmp.eq.s32.totalorder %v57, %v85
    %vm102 = vmor %vm64, %vm86
    %vm103 = vmor %vm65, %vm87
    %vm104 = vmor %vm66, %vm88
    %vm105 = vmor %vm67, %vm89
    %vm106 = vmor %vm68, %vm90
    %vm107 = vmor %vm69, %vm91
    %vm108 = vmor %vm70, %vm92
    %vm109 = vmor %vm71, %vm93
    %vm110 = vmor %vm72, %vm94
    %vm111 = vmor %vm73, %vm95
    %vm112 = vmor %vm74, %vm96
    %vm113 = vmor %vm75, %vm97
    %vm114 = vmor %vm76, %vm98
    %vm115 = vmor %vm77, %vm99
    %vm116 = vmor %vm78, %vm100
    %vm117 = vmor %vm79, %vm101
    %118 = vset.pattern.permute.xlu0 2
    %119 = vperm.xlu0 %118, %v47
    %v120 = vpop.permute.xlu0 %119
    %121 = vset.pattern.permute.xlu0 2
    %122 = vperm.xlu0 %121, %v48
    %v123 = vpop.permute.xlu0 %122
    %vm124 = vcmp.eq.s32.totalorder %v50, %v120
    %vm125 = vcmp.eq.s32.totalorder %v51, %v120
    %vm126 = vcmp.eq.s32.totalorder %v52, %v120
    %vm127 = vcmp.eq.s32.totalorder %v53, %v120
    %vm128 = vcmp.eq.s32.totalorder %v54, %v120
    %vm129 = vcmp.eq.s32.totalorder %v55, %v120
    %vm130 = vcmp.eq.s32.totalorder %v56, %v120
    %vm131 = vcmp.eq.s32.totalorder %v57, %v120
    %vm132 = vcmp.eq.s32.totalorder %v50, %v123
    %vm133 = vcmp.eq.s32.totalorder %v51, %v123
    %vm134 = vcmp.eq.s32.totalorder %v52, %v123
    %vm135 = vcmp.eq.s32.totalorder %v53, %v123
    %vm136 = vcmp.eq.s32.totalorder %v54, %v123
    %vm137 = vcmp.eq.s32.totalorder %v55, %v123
    %vm138 = vcmp.eq.s32.totalorder %v56, %v123
    %vm139 = vcmp.eq.s32.totalorder %v57, %v123
    %vm140 = vmor %vm102, %vm124
    %vm141 = vmor %vm103, %vm125
    %vm142 = vmor %vm104, %vm126
    %vm143 = vmor %vm105, %vm127
    %vm144 = vmor %vm106, %vm128
    %vm145 = vmor %vm107, %vm129
    %vm146 = vmor %vm108, %vm130
    %vm147 = vmor %vm109, %vm131
    %vm148 = vmor %vm110, %vm132
    %vm149 = vmor %vm111, %vm133
    %vm150 = vmor %vm112, %vm134
    %vm151 = vmor %vm113, %vm135
    %vm152 = vmor %vm114, %vm136
    %vm153 = vmor %vm115, %vm137
    %vm154 = vmor %vm116, %vm138
    %vm155 = vmor %vm117, %vm139
    %156 = vset.pattern.permute.xlu0 3
    %157 = vperm.xlu0 %156, %v47
    %v158 = vpop.permute.xlu0 %157
    %159 = vset.pattern.permute.xlu0 3
    %160 = vperm.xlu0 %159, %v48
    %v161 = vpop.permute.xlu0 %160
    %vm162 = vcmp.eq.s32.totalorder %v50, %v158
    %vm163 = vcmp.eq.s32.totalorder %v51, %v158
    %vm164 = vcmp.eq.s32.totalorder %v52, %v158
    %vm165 = vcmp.eq.s32.totalorder %v53, %v158
    %vm166 = vcmp.eq.s32.totalorder %v54, %v158
    %vm167 = vcmp.eq.s32.totalorder %v55, %v158
    %vm168 = vcmp.eq.s32.totalorder %v56, %v158
    %vm169 = vcmp.eq.s32.totalorder %v57, %v158
    %vm170 = vcmp.eq.s32.totalorder %v50, %v161
    %vm171 = vcmp.eq.s32.totalorder %v51, %v161
    %vm172 = vcmp.eq.s32.totalorder %v52, %v161
    %vm173 = vcmp.eq.s32.totalorder %v53, %v161
    %vm174 = vcmp.eq.s32.totalorder %v54, %v161
    %vm175 = vcmp.eq.s32.totalorder %v55, %v161
    %vm176 = vcmp.eq.s32.totalorder %v56, %v161
    %vm177 = vcmp.eq.s32.totalorder %v57, %v161
    %vm178 = vmor %vm140, %vm162
    %vm179 = vmor %vm141, %vm163
    %vm180 = vmor %vm142, %vm164
    %vm181 = vmor %vm143, %vm165
    %vm182 = vmor %vm144, %vm166
    %vm183 = vmor %vm145, %vm167
    %vm184 = vmor %vm146, %vm168
    %vm185 = vmor %vm147, %vm169
    %vm186 = vmor %vm148, %vm170
    %vm187 = vmor %vm149, %vm171
    %vm188 = vmor %vm150, %vm172
    %vm189 = vmor %vm151, %vm173
    %vm190 = vmor %vm152, %vm174
    %vm191 = vmor %vm153, %vm175
    %vm192 = vmor %vm154, %vm176
    %vm193 = vmor %vm155, %vm177
    %v194 = vsel %vm178, 1, 0
    %v195 = vsel %vm179, 1, 0
    %v196 = vsel %vm180, 1, 0
    %v197 = vsel %vm181, 1, 0
    %v198 = vsel %vm182, 1, 0
    %v199 = vsel %vm183, 1, 0
    %v200 = vsel %vm184, 1, 0
    %v201 = vsel %vm185, 1, 0
    %v202 = vsel %vm186, 1, 0
    %v203 = vsel %vm187, 1, 0
    %v204 = vsel %vm188, 1, 0
    %v205 = vsel %vm189, 1, 0
    %v206 = vsel %vm190, 1, 0
    %v207 = vsel %vm191, 1, 0
    %v208 = vsel %vm192, 1, 0
    %v209 = vsel %vm193, 1, 0
    %v210 = vcvt.s32.f32 %v194
    %v211 = vcvt.s32.f32 %v195
    %v212 = vcvt.s32.f32 %v196
    %v213 = vcvt.s32.f32 %v197
    %v214 = vcvt.s32.f32 %v198
    %v215 = vcvt.s32.f32 %v199
    %v216 = vcvt.s32.f32 %v200
    %v217 = vcvt.s32.f32 %v201
    %v218 = vcvt.s32.f32 %v202
    %v219 = vcvt.s32.f32 %v203
    %v220 = vcvt.s32.f32 %v204
    %v221 = vcvt.s32.f32 %v205
    %v222 = vcvt.s32.f32 %v206
    %v223 = vcvt.s32.f32 %v207
    %v224 = vcvt.s32.f32 %v208
    %v225 = vcvt.s32.f32 %v209
    %v226 = vpack.c.bf16 %v218, %v210
    %v227 = vpack.c.bf16 %v219, %v211
    %v228 = vpack.c.bf16 %v220, %v212
    %v229 = vpack.c.bf16 %v221, %v213
    %v230 = vpack.c.bf16 %v222, %v214
    %v231 = vpack.c.bf16 %v223, %v215
    %v232 = vpack.c.bf16 %v224, %v216
    %v233 = vpack.c.bf16 %v225, %v217
    %v234 = vld [vmem:[#allocation2] sm:$0xf]
    %v235 = vld [vmem:[#allocation2 + $0x4] sm:$0xf]
    %v236 = vld [vmem:[#allocation2 + $0x8] sm:$0xf]
    %v237 = vld [vmem:[#allocation2 + $0xc] sm:$0xf]
    %v238 = vld [vmem:[#allocation2 + $0x10] sm:$0xf]
    %v239 = vld [vmem:[#allocation2 + $0x14] sm:$0xf]
    %v240 = vld [vmem:[#allocation2 + $0x18] sm:$0xf]
    %v241 = vld [vmem:[#allocation2 + $0x1c] sm:$0xf]
    %v242 = vld [vmem:[#allocation2 + $0x20] sm:$0xf]
    %v243 = vld [vmem:[#allocation2 + $0x24] sm:$0xf]
    %v244 = vld [vmem:[#allocation2 + $0x28] sm:$0xf]
    %v245 = vld [vmem:[#allocation2 + $0x2c] sm:$0xf]
    %v246 = vld [vmem:[#allocation2 + $0x30] sm:$0xf]
    %v247 = vld [vmem:[#allocation2 + $0x34] sm:$0xf]
    %v248 = vld [vmem:[#allocation2 + $0x38] sm:$0xf]
    %v249 = vld [vmem:[#allocation2 + $0x3c] sm:$0xf]
    %v250 = vld [vmem:[#allocation2 + $0x40] sm:$0xf]
    %v251 = vld [vmem:[#allocation2 + $0x44] sm:$0xf]
    %v252 = vld [vmem:[#allocation2 + $0x48] sm:$0xf]
    %v253 = vld [vmem:[#allocation2 + $0x4c] sm:$0xf]
    %v254 = vld [vmem:[#allocation2 + $0x50] sm:$0xf]
    %v255 = vld [vmem:[#allocation2 + $0x54] sm:$0xf]
    %v256 = vld [vmem:[#allocation2 + $0x58] sm:$0xf]
    %v257 = vld [vmem:[#allocation2 + $0x5c] sm:$0xf]
    %v258 = vld [vmem:[#allocation2 + $0x60] sm:$0xf]
    %v259 = vld [vmem:[#allocation2 + $0x64] sm:$0xf]
    %v260 = vld [vmem:[#allocation2 + $0x68] sm:$0xf]
    %v261 = vld [vmem:[#allocation2 + $0x6c] sm:$0xf]
    %v262 = vld [vmem:[#allocation2 + $0x70] sm:$0xf]
    %v263 = vld [vmem:[#allocation2 + $0x74] sm:$0xf]
    %v264 = vld [vmem:[#allocation2 + $0x78] sm:$0xf]
    %v265 = vld [vmem:[#allocation2 + $0x7c] sm:$0xf]
    %v266 = vld [vmem:[#allocation2 + $0x80] sm:$0xf]
    %v267 = vld [vmem:[#allocation2 + $0x84] sm:$0xf]
    %v268 = vld [vmem:[#allocation2 + $0x88] sm:$0xf]
    %v269 = vld [vmem:[#allocation2 + $0x8c] sm:$0xf]
    %v270 = vld [vmem:[#allocation2 + $0x90] sm:$0xf]
    %v271 = vld [vmem:[#allocation2 + $0x94] sm:$0xf]
    %v272 = vld [vmem:[#allocation2 + $0x98] sm:$0xf]
    %v273 = vld [vmem:[#allocation2 + $0x9c] sm:$0xf]
    %v274 = vld [vmem:[#allocation2 + $0xa0] sm:$0xf]
    %v275 = vld [vmem:[#allocation2 + $0xa4] sm:$0xf]
    %v276 = vld [vmem:[#allocation2 + $0xa8] sm:$0xf]
    %v277 = vld [vmem:[#allocation2 + $0xac] sm:$0xf]
    %v278 = vld [vmem:[#allocation2 + $0xb0] sm:$0xf]
    %v279 = vld [vmem:[#allocation2 + $0xb4] sm:$0xf]
    %v280 = vld [vmem:[#allocation2 + $0xb8] sm:$0xf]
    %v281 = vld [vmem:[#allocation2 + $0xbc] sm:$0xf]
    %v282 = vld [vmem:[#allocation2 + $0xc0] sm:$0xf]
    %v283 = vld [vmem:[#allocation2 + $0xc4] sm:$0xf]
    %v284 = vld [vmem:[#allocation2 + $0xc8] sm:$0xf]
    %v285 = vld [vmem:[#allocation2 + $0xcc] sm:$0xf]
    %v286 = vld [vmem:[#allocation2 + $0xd0] sm:$0xf]
    %v287 = vld [vmem:[#allocation2 + $0xd4] sm:$0xf]
    %v288 = vld [vmem:[#allocation2 + $0xd8] sm:$0xf]
    %v289 = vld [vmem:[#allocation2 + $0xdc] sm:$0xf]
    %v290 = vld [vmem:[#allocation2 + $0xe0] sm:$0xf]
    %v291 = vld [vmem:[#allocation2 + $0xe4] sm:$0xf]
    %v292 = vld [vmem:[#allocation2 + $0xe8] sm:$0xf]
    %v293 = vld [vmem:[#allocation2 + $0xec] sm:$0xf]
    %v294 = vld [vmem:[#allocation2 + $0xf0] sm:$0xf]
    %v295 = vld [vmem:[#allocation2 + $0xf4] sm:$0xf]
    %v296 = vld [vmem:[#allocation2 + $0xf8] sm:$0xf]
    %v297 = vld [vmem:[#allocation2 + $0xfc] sm:$0xf]
    %v298 = vld [vmem:[#allocation2 + $0x100] sm:$0xf]
    %v299 = vld [vmem:[#allocation2 + $0x104] sm:$0xf]
    %v300 = vld [vmem:[#allocation2 + $0x108] sm:$0xf]
    %v301 = vld [vmem:[#allocation2 + $0x10c] sm:$0xf]
    %v302 = vld [vmem:[#allocation2 + $0x110] sm:$0xf]
    %v303 = vld [vmem:[#allocation2 + $0x114] sm:$0xf]
    %v304 = vld [vmem:[#allocation2 + $0x118] sm:$0xf]
    %v305 = vld [vmem:[#allocation2 + $0x11c] sm:$0xf]
    %v306 = vld [vmem:[#allocation2 + $0x120] sm:$0xf]
    %v307 = vld [vmem:[#allocation2 + $0x124] sm:$0xf]
    %v308 = vld [vmem:[#allocation2 + $0x128] sm:$0xf]
    %v309 = vld [vmem:[#allocation2 + $0x12c] sm:$0xf]
    %v310 = vld [vmem:[#allocation2 + $0x130] sm:$0xf]
    %v311 = vld [vmem:[#allocation2 + $0x134] sm:$0xf]
    %v312 = vld [vmem:[#allocation2 + $0x138] sm:$0xf]
    %v313 = vld [vmem:[#allocation2 + $0x13c] sm:$0xf]
    %v314 = vld [vmem:[#allocation2 + $0x140] sm:$0xf]
    %v315 = vld [vmem:[#allocation2 + $0x144] sm:$0xf]
    %v316 = vld [vmem:[#allocation2 + $0x148] sm:$0xf]
    %v317 = vld [vmem:[#allocation2 + $0x14c] sm:$0xf]
    %v318 = vld [vmem:[#allocation2 + $0x150] sm:$0xf]
    %v319 = vld [vmem:[#allocation2 + $0x154] sm:$0xf]
    %v320 = vld [vmem:[#allocation2 + $0x158] sm:$0xf]
    %v321 = vld [vmem:[#allocation2 + $0x15c] sm:$0xf]
    %v322 = vld [vmem:[#allocation2 + $0x160] sm:$0xf]
    %v323 = vld [vmem:[#allocation2 + $0x164] sm:$0xf]
    %v324 = vld [vmem:[#allocation2 + $0x168] sm:$0xf]
    %v325 = vld [vmem:[#allocation2 + $0x16c] sm:$0xf]
    %v326 = vld [vmem:[#allocation2 + $0x170] sm:$0xf]
    %v327 = vld [vmem:[#allocation2 + $0x174] sm:$0xf]
    %v328 = vld [vmem:[#allocation2 + $0x178] sm:$0xf]
    %v329 = vld [vmem:[#allocation2 + $0x17c] sm:$0xf]
    %v330 = vld [vmem:[#allocation2 + $0x180] sm:$0xf]
    %v331 = vld [vmem:[#allocation2 + $0x184] sm:$0xf]
    %v332 = vld [vmem:[#allocation2 + $0x188] sm:$0xf]
    %v333 = vld [vmem:[#allocation2 + $0x18c] sm:$0xf]
    %v334 = vld [vmem:[#allocation2 + $0x190] sm:$0xf]
    %v335 = vld [vmem:[#allocation2 + $0x194] sm:$0xf]
    %v336 = vld [vmem:[#allocation2 + $0x198] sm:$0xf]
    %v337 = vld [vmem:[#allocation2 + $0x19c] sm:$0xf]
    %v338 = vld [vmem:[#allocation2 + $0x1a0] sm:$0xf]
    %v339 = vld [vmem:[#allocation2 + $0x1a4] sm:$0xf]
    %v340 = vld [vmem:[#allocation2 + $0x1a8] sm:$0xf]
    %v341 = vld [vmem:[#allocation2 + $0x1ac] sm:$0xf]
    %v342 = vld [vmem:[#allocation2 + $0x1b0] sm:$0xf]
    %v343 = vld [vmem:[#allocation2 + $0x1b4] sm:$0xf]
    %v344 = vld [vmem:[#allocation2 + $0x1b8] sm:$0xf]
    %v345 = vld [vmem:[#allocation2 + $0x1bc] sm:$0xf]
    %v346 = vld [vmem:[#allocation2 + $0x1c0] sm:$0xf]
    %v347 = vld [vmem:[#allocation2 + $0x1c4] sm:$0xf]
    %v348 = vld [vmem:[#allocation2 + $0x1c8] sm:$0xf]
    %v349 = vld [vmem:[#allocation2 + $0x1cc] sm:$0xf]
    %v350 = vld [vmem:[#allocation2 + $0x1d0] sm:$0xf]
    %v351 = vld [vmem:[#allocation2 + $0x1d4] sm:$0xf]
    %v352 = vld [vmem:[#allocation2 + $0x1d8] sm:$0xf]
    %v353 = vld [vmem:[#allocation2 + $0x1dc] sm:$0xf]
    %v354 = vld [vmem:[#allocation2 + $0x1e0] sm:$0xf]
    %v355 = vld [vmem:[#allocation2 + $0x1e4] sm:$0xf]
    %v356 = vld [vmem:[#allocation2 + $0x1e8] sm:$0xf]
    %v357 = vld [vmem:[#allocation2 + $0x1ec] sm:$0xf]
    %v358 = vld [vmem:[#allocation2 + $0x1f0] sm:$0xf]
    %v359 = vld [vmem:[#allocation2 + $0x1f4] sm:$0xf]
    %v360 = vld [vmem:[#allocation2 + $0x1f8] sm:$0xf]
    %v361 = vld [vmem:[#allocation2 + $0x1fc] sm:$0xf]
    %v362 = vld [vmem:[#allocation5] sm:$0xf]
    %v363 = vld [vmem:[#allocation5 + $0x4] sm:$0xf]
    %v364 = vld [vmem:[#allocation5 + $0x8] sm:$0xf]
    %v365 = vld [vmem:[#allocation5 + $0xc] sm:$0xf]
    %v366 = vld [vmem:[#allocation5 + $0x10] sm:$0xf]
    %v367 = vld [vmem:[#allocation5 + $0x14] sm:$0xf]
    %v368 = vld [vmem:[#allocation5 + $0x18] sm:$0xf]
    %v369 = vld [vmem:[#allocation5 + $0x1c] sm:$0xf]
    %v370 = vld [vmem:[#allocation5 + $0x20] sm:$0xf]
    %v371 = vld [vmem:[#allocation5 + $0x24] sm:$0xf]
    %v372 = vld [vmem:[#allocation5 + $0x28] sm:$0xf]
    %v373 = vld [vmem:[#allocation5 + $0x2c] sm:$0xf]
    %v374 = vld [vmem:[#allocation5 + $0x30] sm:$0xf]
    %v375 = vld [vmem:[#allocation5 + $0x34] sm:$0xf]
    %v376 = vld [vmem:[#allocation5 + $0x38] sm:$0xf]
    %v377 = vld [vmem:[#allocation5 + $0x3c] sm:$0xf]
    %v378 = vld [vmem:[#allocation5 + $0x40] sm:$0xf]
    %v379 = vld [vmem:[#allocation5 + $0x44] sm:$0xf]
    %v380 = vld [vmem:[#allocation5 + $0x48] sm:$0xf]
    %v381 = vld [vmem:[#allocation5 + $0x4c] sm:$0xf]
    %v382 = vld [vmem:[#allocation5 + $0x50] sm:$0xf]
    %v383 = vld [vmem:[#allocation5 + $0x54] sm:$0xf]
    %v384 = vld [vmem:[#allocation5 + $0x58] sm:$0xf]
    %v385 = vld [vmem:[#allocation5 + $0x5c] sm:$0xf]
    %v386 = vld [vmem:[#allocation5 + $0x60] sm:$0xf]
    %v387 = vld [vmem:[#allocation5 + $0x64] sm:$0xf]
    %v388 = vld [vmem:[#allocation5 + $0x68] sm:$0xf]
    %v389 = vld [vmem:[#allocation5 + $0x6c] sm:$0xf]
    %v390 = vld [vmem:[#allocation5 + $0x70] sm:$0xf]
    %v391 = vld [vmem:[#allocation5 + $0x74] sm:$0xf]
    %v392 = vld [vmem:[#allocation5 + $0x78] sm:$0xf]
    %v393 = vld [vmem:[#allocation5 + $0x7c] sm:$0xf]
    %v394 = vld [vmem:[#allocation5 + $0x80] sm:$0xf]
    %v395 = vld [vmem:[#allocation5 + $0x84] sm:$0xf]
    %v396 = vld [vmem:[#allocation5 + $0x88] sm:$0xf]
    %v397 = vld [vmem:[#allocation5 + $0x8c] sm:$0xf]
    %v398 = vld [vmem:[#allocation5 + $0x90] sm:$0xf]
    %v399 = vld [vmem:[#allocation5 + $0x94] sm:$0xf]
    %v400 = vld [vmem:[#allocation5 + $0x98] sm:$0xf]
    %v401 = vld [vmem:[#allocation5 + $0x9c] sm:$0xf]
    %v402 = vld [vmem:[#allocation5 + $0xa0] sm:$0xf]
    %v403 = vld [vmem:[#allocation5 + $0xa4] sm:$0xf]
    %v404 = vld [vmem:[#allocation5 + $0xa8] sm:$0xf]
    %v405 = vld [vmem:[#allocation5 + $0xac] sm:$0xf]
    %v406 = vld [vmem:[#allocation5 + $0xb0] sm:$0xf]
    %v407 = vld [vmem:[#allocation5 + $0xb4] sm:$0xf]
    %v408 = vld [vmem:[#allocation5 + $0xb8] sm:$0xf]
    %v409 = vld [vmem:[#allocation5 + $0xbc] sm:$0xf]
    %v410 = vld [vmem:[#allocation5 + $0xc0] sm:$0xf]
    %v411 = vld [vmem:[#allocation5 + $0xc4] sm:$0xf]
    %v412 = vld [vmem:[#allocation5 + $0xc8] sm:$0xf]
    %v413 = vld [vmem:[#allocation5 + $0xcc] sm:$0xf]
    %v414 = vld [vmem:[#allocation5 + $0xd0] sm:$0xf]
    %v415 = vld [vmem:[#allocation5 + $0xd4] sm:$0xf]
    %v416 = vld [vmem:[#allocation5 + $0xd8] sm:$0xf]
    %v417 = vld [vmem:[#allocation5 + $0xdc] sm:$0xf]
    %v418 = vld [vmem:[#allocation5 + $0xe0] sm:$0xf]
    %v419 = vld [vmem:[#allocation5 + $0xe4] sm:$0xf]
    %v420 = vld [vmem:[#allocation5 + $0xe8] sm:$0xf]
    %v421 = vld [vmem:[#allocation5 + $0xec] sm:$0xf]
    %v422 = vld [vmem:[#allocation5 + $0xf0] sm:$0xf]
    %v423 = vld [vmem:[#allocation5 + $0xf4] sm:$0xf]
    %v424 = vld [vmem:[#allocation5 + $0xf8] sm:$0xf]
    %v425 = vld [vmem:[#allocation5 + $0xfc] sm:$0xf]
    %v426 = vld [vmem:[#allocation5 + $0x100] sm:$0xf]
    %v427 = vld [vmem:[#allocation5 + $0x104] sm:$0xf]
    %v428 = vld [vmem:[#allocation5 + $0x108] sm:$0xf]
    %v429 = vld [vmem:[#allocation5 + $0x10c] sm:$0xf]
    %v430 = vld [vmem:[#allocation5 + $0x110] sm:$0xf]
    %v431 = vld [vmem:[#allocation5 + $0x114] sm:$0xf]
    %v432 = vld [vmem:[#allocation5 + $0x118] sm:$0xf]
    %v433 = vld [vmem:[#allocation5 + $0x11c] sm:$0xf]
    %v434 = vld [vmem:[#allocation5 + $0x120] sm:$0xf]
    %v435 = vld [vmem:[#allocation5 + $0x124] sm:$0xf]
    %v436 = vld [vmem:[#allocation5 + $0x128] sm:$0xf]
    %v437 = vld [vmem:[#allocation5 + $0x12c] sm:$0xf]
    %v438 = vld [vmem:[#allocation5 + $0x130] sm:$0xf]
    %v439 = vld [vmem:[#allocation5 + $0x134] sm:$0xf]
    %v440 = vld [vmem:[#allocation5 + $0x138] sm:$0xf]
    %v441 = vld [vmem:[#allocation5 + $0x13c] sm:$0xf]
    %v442 = vld [vmem:[#allocation5 + $0x140] sm:$0xf]
    %v443 = vld [vmem:[#allocation5 + $0x144] sm:$0xf]
    %v444 = vld [vmem:[#allocation5 + $0x148] sm:$0xf]
    %v445 = vld [vmem:[#allocation5 + $0x14c] sm:$0xf]
    %v446 = vld [vmem:[#allocation5 + $0x150] sm:$0xf]
    %v447 = vld [vmem:[#allocation5 + $0x154] sm:$0xf]
    %v448 = vld [vmem:[#allocation5 + $0x158] sm:$0xf]
    %v449 = vld [vmem:[#allocation5 + $0x15c] sm:$0xf]
    %v450 = vld [vmem:[#allocation5 + $0x160] sm:$0xf]
    %v451 = vld [vmem:[#allocation5 + $0x164] sm:$0xf]
    %v452 = vld [vmem:[#allocation5 + $0x168] sm:$0xf]
    %v453 = vld [vmem:[#allocation5 + $0x16c] sm:$0xf]
    %v454 = vld [vmem:[#allocation5 + $0x170] sm:$0xf]
    %v455 = vld [vmem:[#allocation5 + $0x174] sm:$0xf]
    %v456 = vld [vmem:[#allocation5 + $0x178] sm:$0xf]
    %v457 = vld [vmem:[#allocation5 + $0x17c] sm:$0xf]
    %v458 = vld [vmem:[#allocation5 + $0x180] sm:$0xf]
    %v459 = vld [vmem:[#allocation5 + $0x184] sm:$0xf]
    %v460 = vld [vmem:[#allocation5 + $0x188] sm:$0xf]
    %v461 = vld [vmem:[#allocation5 + $0x18c] sm:$0xf]
    %v462 = vld [vmem:[#allocation5 + $0x190] sm:$0xf]
    %v463 = vld [vmem:[#allocation5 + $0x194] sm:$0xf]
    %v464 = vld [vmem:[#allocation5 + $0x198] sm:$0xf]
    %v465 = vld [vmem:[#allocation5 + $0x19c] sm:$0xf]
    %v466 = vld [vmem:[#allocation5 + $0x1a0] sm:$0xf]
    %v467 = vld [vmem:[#allocation5 + $0x1a4] sm:$0xf]
    %v468 = vld [vmem:[#allocation5 + $0x1a8] sm:$0xf]
    %v469 = vld [vmem:[#allocation5 + $0x1ac] sm:$0xf]
    %v470 = vld [vmem:[#allocation5 + $0x1b0] sm:$0xf]
    %v471 = vld [vmem:[#allocation5 + $0x1b4] sm:$0xf]
    %v472 = vld [vmem:[#allocation5 + $0x1b8] sm:$0xf]
    %v473 = vld [vmem:[#allocation5 + $0x1bc] sm:$0xf]
    %v474 = vld [vmem:[#allocation5 + $0x1c0] sm:$0xf]
    %v475 = vld [vmem:[#allocation5 + $0x1c4] sm:$0xf]
    %v476 = vld [vmem:[#allocation5 + $0x1c8] sm:$0xf]
    %v477 = vld [vmem:[#allocation5 + $0x1cc] sm:$0xf]
    %v478 = vld [vmem:[#allocation5 + $0x1d0] sm:$0xf]
    %v479 = vld [vmem:[#allocation5 + $0x1d4] sm:$0xf]
    %v480 = vld [vmem:[#allocation5 + $0x1d8] sm:$0xf]
    %v481 = vld [vmem:[#allocation5 + $0x1dc] sm:$0xf]
    %v482 = vld [vmem:[#allocation5 + $0x1e0] sm:$0xf]
    %v483 = vld [vmem:[#allocation5 + $0x1e4] sm:$0xf]
    %v484 = vld [vmem:[#allocation5 + $0x1e8] sm:$0xf]
    %v485 = vld [vmem:[#allocation5 + $0x1ec] sm:$0xf]
    %v486 = vld [vmem:[#allocation5 + $0x1f0] sm:$0xf]
    %v487 = vld [vmem:[#allocation5 + $0x1f4] sm:$0xf]
    %v488 = vld [vmem:[#allocation5 + $0x1f8] sm:$0xf]
    %v489 = vld [vmem:[#allocation5 + $0x1fc] sm:$0xf]
    %v618 = vunpack.c.l.b16 %v362
    %v619 = vunpack.c.l.b16 %v363
    %v620 = vunpack.c.l.b16 %v364
    %v621 = vunpack.c.l.b16 %v365
    %v622 = vunpack.c.l.b16 %v366
    %v623 = vunpack.c.l.b16 %v367
    %v624 = vunpack.c.l.b16 %v368
    %v625 = vunpack.c.l.b16 %v369
    %v626 = vunpack.c.l.b16 %v370
    %v627 = vunpack.c.l.b16 %v371
    %v628 = vunpack.c.l.b16 %v372
    %v629 = vunpack.c.l.b16 %v373
    %v630 = vunpack.c.l.b16 %v374
    %v631 = vunpack.c.l.b16 %v375
    %v632 = vunpack.c.l.b16 %v376
    %v633 = vunpack.c.l.b16 %v377
    %v634 = vunpack.c.l.b16 %v378
    %v635 = vunpack.c.l.b16 %v379
    %v636 = vunpack.c.l.b16 %v380
    %v637 = vunpack.c.l.b16 %v381
    %v638 = vunpack.c.l.b16 %v382
    %v639 = vunpack.c.l.b16 %v383
    %v640 = vunpack.c.l.b16 %v384
    %v641 = vunpack.c.l.b16 %v385
    %v642 = vunpack.c.l.b16 %v386
    %v643 = vunpack.c.l.b16 %v387
    %v644 = vunpack.c.l.b16 %v388
    %v645 = vunpack.c.l.b16 %v389
    %v646 = vunpack.c.l.b16 %v390
    %v647 = vunpack.c.l.b16 %v391
    %v648 = vunpack.c.l.b16 %v392
    %v649 = vunpack.c.l.b16 %v393
    %v650 = vunpack.c.l.b16 %v394
    %v651 = vunpack.c.l.b16 %v395
    %v652 = vunpack.c.l.b16 %v396
    %v653 = vunpack.c.l.b16 %v397
    %v654 = vunpack.c.l.b16 %v398
    %v655 = vunpack.c.l.b16 %v399
    %v656 = vunpack.c.l.b16 %v400
    %v657 = vunpack.c.l.b16 %v401
    %v658 = vunpack.c.l.b16 %v402
    %v659 = vunpack.c.l.b16 %v403
    %v660 = vunpack.c.l.b16 %v404
    %v661 = vunpack.c.l.b16 %v405
    %v662 = vunpack.c.l.b16 %v406
    %v663 = vunpack.c.l.b16 %v407
    %v664 = vunpack.c.l.b16 %v408
    %v665 = vunpack.c.l.b16 %v409
    %v666 = vunpack.c.l.b16 %v410
    %v667 = vunpack.c.l.b16 %v411
    %v668 = vunpack.c.l.b16 %v412
    %v669 = vunpack.c.l.b16 %v413
    %v670 = vunpack.c.l.b16 %v414
    %v671 = vunpack.c.l.b16 %v415
    %v672 = vunpack.c.l.b16 %v416
    %v673 = vunpack.c.l.b16 %v417
    %v674 = vunpack.c.l.b16 %v418
    %v675 = vunpack.c.l.b16 %v419
    %v676 = vunpack.c.l.b16 %v420
    %v677 = vunpack.c.l.b16 %v421
    %v678 = vunpack.c.l.b16 %v422
    %v679 = vunpack.c.l.b16 %v423
    %v680 = vunpack.c.l.b16 %v424
    %v681 = vunpack.c.l.b16 %v425
    %v682 = vunpack.c.l.b16 %v426
    %v683 = vunpack.c.l.b16 %v427
    %v684 = vunpack.c.l.b16 %v428
    %v685 = vunpack.c.l.b16 %v429
    %v686 = vunpack.c.l.b16 %v430
    %v687 = vunpack.c.l.b16 %v431
    %v688 = vunpack.c.l.b16 %v432
    %v689 = vunpack.c.l.b16 %v433
    %v690 = vunpack.c.l.b16 %v434
    %v691 = vunpack.c.l.b16 %v435
    %v692 = vunpack.c.l.b16 %v436
    %v693 = vunpack.c.l.b16 %v437
    %v694 = vunpack.c.l.b16 %v438
    %v695 = vunpack.c.l.b16 %v439
    %v696 = vunpack.c.l.b16 %v440
    %v697 = vunpack.c.l.b16 %v441
    %v698 = vunpack.c.l.b16 %v442
    %v699 = vunpack.c.l.b16 %v443
    %v700 = vunpack.c.l.b16 %v444
    %v701 = vunpack.c.l.b16 %v445
    %v702 = vunpack.c.l.b16 %v446
    %v703 = vunpack.c.l.b16 %v447
    %v704 = vunpack.c.l.b16 %v448
    %v705 = vunpack.c.l.b16 %v449
    %v706 = vunpack.c.l.b16 %v450
    %v707 = vunpack.c.l.b16 %v451
    %v708 = vunpack.c.l.b16 %v452
    %v709 = vunpack.c.l.b16 %v453
    %v710 = vunpack.c.l.b16 %v454
    %v711 = vunpack.c.l.b16 %v455
    %v712 = vunpack.c.l.b16 %v456
    %v713 = vunpack.c.l.b16 %v457
    %v714 = vunpack.c.l.b16 %v458
    %v715 = vunpack.c.l.b16 %v459
    %v716 = vunpack.c.l.b16 %v460
    %v717 = vunpack.c.l.b16 %v461
    %v718 = vunpack.c.l.b16 %v462
    %v719 = vunpack.c.l.b16 %v463
    %v720 = vunpack.c.l.b16 %v464
    %v721 = vunpack.c.l.b16 %v465
    %v722 = vunpack.c.l.b16 %v466
    %v723 = vunpack.c.l.b16 %v467
    %v724 = vunpack.c.l.b16 %v468
    %v725 = vunpack.c.l.b16 %v469
    %v726 = vunpack.c.l.b16 %v470
    %v727 = vunpack.c.l.b16 %v471
    %v728 = vunpack.c.l.b16 %v472
    %v729 = vunpack.c.l.b16 %v473
    %v730 = vunpack.c.l.b16 %v474
    %v731 = vunpack.c.l.b16 %v475
    %v732 = vunpack.c.l.b16 %v476
    %v733 = vunpack.c.l.b16 %v477
    %v734 = vunpack.c.l.b16 %v478
    %v735 = vunpack.c.l.b16 %v479
    %v736 = vunpack.c.l.b16 %v480
    %v737 = vunpack.c.l.b16 %v481
    %v738 = vunpack.c.l.b16 %v482
    %v739 = vunpack.c.l.b16 %v483
    %v740 = vunpack.c.l.b16 %v484
    %v741 = vunpack.c.l.b16 %v485
    %v742 = vunpack.c.l.b16 %v486
    %v743 = vunpack.c.l.b16 %v487
    %v744 = vunpack.c.l.b16 %v488
    %v745 = vunpack.c.l.b16 %v489
    %v746 = vpack.c.b16 %v619, %v618
    %v747 = vpack.c.b16 %v621, %v620
    %v748 = vpack.c.b16 %v623, %v622
    %v749 = vpack.c.b16 %v625, %v624
    %v750 = vpack.c.b16 %v627, %v626
    %v751 = vpack.c.b16 %v629, %v628
    %v752 = vpack.c.b16 %v631, %v630
    %v753 = vpack.c.b16 %v633, %v632
    %v754 = vpack.c.b16 %v635, %v634
    %v755 = vpack.c.b16 %v637, %v636
    %v756 = vpack.c.b16 %v639, %v638
    %v757 = vpack.c.b16 %v641, %v640
    %v758 = vpack.c.b16 %v643, %v642
    %v759 = vpack.c.b16 %v645, %v644
    %v760 = vpack.c.b16 %v647, %v646
    %v761 = vpack.c.b16 %v649, %v648
    %v762 = vpack.c.b16 %v651, %v650
    %v763 = vpack.c.b16 %v653, %v652
    %v764 = vpack.c.b16 %v655, %v654
    %v765 = vpack.c.b16 %v657, %v656
    %v766 = vpack.c.b16 %v659, %v658
    %v767 = vpack.c.b16 %v661, %v660
    %v768 = vpack.c.b16 %v663, %v662
    %v769 = vpack.c.b16 %v665, %v664
    %v770 = vpack.c.b16 %v667, %v666
    %v771 = vpack.c.b16 %v669, %v668
    %v772 = vpack.c.b16 %v671, %v670
    %v773 = vpack.c.b16 %v673, %v672
    %v774 = vpack.c.b16 %v675, %v674
    %v775 = vpack.c.b16 %v677, %v676
    %v776 = vpack.c.b16 %v679, %v678
    %v777 = vpack.c.b16 %v681, %v680
    %v778 = vpack.c.b16 %v683, %v682
    %v779 = vpack.c.b16 %v685, %v684
    %v780 = vpack.c.b16 %v687, %v686
    %v781 = vpack.c.b16 %v689, %v688
    %v782 = vpack.c.b16 %v691, %v690
    %v783 = vpack.c.b16 %v693, %v692
    %v784 = vpack.c.b16 %v695, %v694
    %v785 = vpack.c.b16 %v697, %v696
    %v786 = vpack.c.b16 %v699, %v698
    %v787 = vpack.c.b16 %v701, %v700
    %v788 = vpack.c.b16 %v703, %v702
    %v789 = vpack.c.b16 %v705, %v704
    %v790 = vpack.c.b16 %v707, %v706
    %v791 = vpack.c.b16 %v709, %v708
    %v792 = vpack.c.b16 %v711, %v710
    %v793 = vpack.c.b16 %v713, %v712
    %v794 = vpack.c.b16 %v715, %v714
    %v795 = vpack.c.b16 %v717, %v716
    %v796 = vpack.c.b16 %v719, %v718
    %v797 = vpack.c.b16 %v721, %v720
    %v798 = vpack.c.b16 %v723, %v722
    %v799 = vpack.c.b16 %v725, %v724
    %v800 = vpack.c.b16 %v727, %v726
    %v801 = vpack.c.b16 %v729, %v728
    %v802 = vpack.c.b16 %v731, %v730
    %v803 = vpack.c.b16 %v733, %v732
    %v804 = vpack.c.b16 %v735, %v734
    %v805 = vpack.c.b16 %v737, %v736
    %v806 = vpack.c.b16 %v739, %v738
    %v807 = vpack.c.b16 %v741, %v740
    %v808 = vpack.c.b16 %v743, %v742
    %v809 = vpack.c.b16 %v745, %v744
    %874 = vmatpush.bf16.msra.mxu0 %v753
    %875 = vmatpush.bf16.msra.mxu0 %v752
    %876 = vmatpush.bf16.msra.mxu0 %v751
    %877 = vmatpush.bf16.msra.mxu0 %v750
    %878 = vmatpush.bf16.msra.mxu0 %v749
    %879 = vmatpush.bf16.msra.mxu0 %v748
    %880 = vmatpush.bf16.msra.mxu0 %v747
    %881 = vmatpush.bf16.msra.mxu0 %v746
    %882 = vmatmul.bf16.gmra.mxu0 %v226
    %v883 = vpop.f32.mrf.mxu0
    %v884 = vadd.f32 0.0, %v883
    %v885 = vpop.f32.mrf.mxu0
    %v886 = vadd.f32 0.0, %v885
    %887 = vdwg.mxu0
    %888 = vmatpush.bf16.msra.mxu0 %v761
    %889 = vmatpush.bf16.msra.mxu0 %v760
    %890 = vmatpush.bf16.msra.mxu0 %v759
    %891 = vmatpush.bf16.msra.mxu0 %v758
    %892 = vmatpush.bf16.msra.mxu0 %v757
    %893 = vmatpush.bf16.msra.mxu0 %v756
    %894 = vmatpush.bf16.msra.mxu0 %v755
    %895 = vmatpush.bf16.msra.mxu0 %v754
    %896 = vmatmul.bf16.gmra.mxu0 %v227
    %v897 = vpop.f32.mrf.mxu0
    %v898 = vadd.f32 %v884, %v897
    %v899 = vpop.f32.mrf.mxu0
    %v900 = vadd.f32 %v886, %v899
    %901 = vdwg.mxu0
    %902 = vmatpush.bf16.msra.mxu0 %v769
    %903 = vmatpush.bf16.msra.mxu0 %v768
    %904 = vmatpush.bf16.msra.mxu0 %v767
    %905 = vmatpush.bf16.msra.mxu0 %v766
    %906 = vmatpush.bf16.msra.mxu0 %v765
    %907 = vmatpush.bf16.msra.mxu0 %v764
    %908 = vmatpush.bf16.msra.mxu0 %v763
    %909 = vmatpush.bf16.msra.mxu0 %v762
    %910 = vmatmul.bf16.gmra.mxu0 %v228
    %v911 = vpop.f32.mrf.mxu0
    %v912 = vadd.f32 %v898, %v911
    %v913 = vpop.f32.mrf.mxu0
    %v914 = vadd.f32 %v900, %v913
    %915 = vdwg.mxu0
    %916 = vmatpush.bf16.msra.mxu0 %v777
    %917 = vmatpush.bf16.msra.mxu0 %v776
    %918 = vmatpush.bf16.msra.mxu0 %v775
    %919 = vmatpush.bf16.msra.mxu0 %v774
    %920 = vmatpush.bf16.msra.mxu0 %v773
    %921 = vmatpush.bf16.msra.mxu0 %v772
    %922 = vmatpush.bf16.msra.mxu0 %v771
    %923 = vmatpush.bf16.msra.mxu0 %v770
    %924 = vmatmul.bf16.gmra.mxu0 %v229
    %v925 = vpop.f32.mrf.mxu0
    %v926 = vadd.f32 %v912, %v925
    %v927 = vpop.f32.mrf.mxu0
    %v928 = vadd.f32 %v914, %v927
    %929 = vdwg.mxu0
    %930 = vmatpush.bf16.msra.mxu0 %v785
    %931 = vmatpush.bf16.msra.mxu0 %v784
    %932 = vmatpush.bf16.msra.mxu0 %v783
    %933 = vmatpush.bf16.msra.mxu0 %v782
    %934 = vmatpush.bf16.msra.mxu0 %v781
    %935 = vmatpush.bf16.msra.mxu0 %v780
    %936 = vmatpush.bf16.msra.mxu0 %v779
    %937 = vmatpush.bf16.msra.mxu0 %v778
    %938 = vmatmul.bf16.gmra.mxu0 %v230
    %v939 = vpop.f32.mrf.mxu0
    %v940 = vadd.f32 %v926, %v939
    %v941 = vpop.f32.mrf.mxu0
    %v942 = vadd.f32 %v928, %v941
    %943 = vdwg.mxu0
    %944 = vmatpush.bf16.msra.mxu0 %v793
    %945 = vmatpush.bf16.msra.mxu0 %v792
    %946 = vmatpush.bf16.msra.mxu0 %v791
    %947 = vmatpush.bf16.msra.mxu0 %v790
    %948 = vmatpush.bf16.msra.mxu0 %v789
    %949 = vmatpush.bf16.msra.mxu0 %v788
    %950 = vmatpush.bf16.msra.mxu0 %v787
    %951 = vmatpush.bf16.msra.mxu0 %v786
    %952 = vmatmul.bf16.gmra.mxu0 %v231
    %v953 = vpop.f32.mrf.mxu0
    %v954 = vadd.f32 %v940, %v953
    %v955 = vpop.f32.mrf.mxu0
    %v956 = vadd.f32 %v942, %v955
    %957 = vdwg.mxu0
    %958 = vmatpush.bf16.msra.mxu0 %v801
    %959 = vmatpush.bf16.msra.mxu0 %v800
    %960 = vmatpush.bf16.msra.mxu0 %v799
    %961 = vmatpush.bf16.msra.mxu0 %v798
    %962 = vmatpush.bf16.msra.mxu0 %v797
    %963 = vmatpush.bf16.msra.mxu0 %v796
    %964 = vmatpush.bf16.msra.mxu0 %v795
    %965 = vmatpush.bf16.msra.mxu0 %v794
    %966 = vmatmul.bf16.gmra.mxu0 %v232
    %v967 = vpop.f32.mrf.mxu0
    %v968 = vadd.f32 %v954, %v967
    %v969 = vpop.f32.mrf.mxu0
    %v970 = vadd.f32 %v956, %v969
    %971 = vdwg.mxu0
    %972 = vmatpush.bf16.msra.mxu0 %v809
    %973 = vmatpush.bf16.msra.mxu0 %v808
    %974 = vmatpush.bf16.msra.mxu0 %v807
    %975 = vmatpush.bf16.msra.mxu0 %v806
    %976 = vmatpush.bf16.msra.mxu0 %v805
    %977 = vmatpush.bf16.msra.mxu0 %v804
    %978 = vmatpush.bf16.msra.mxu0 %v803
    %979 = vmatpush.bf16.msra.mxu0 %v802
    %980 = vmatmul.bf16.gmra.mxu0 %v233
    %v981 = vpop.f32.mrf.mxu0
    %v982 = vadd.f32 %v968, %v981
    %v983 = vpop.f32.mrf.mxu0
    %v984 = vadd.f32 %v970, %v983
    %985 = vdwg.mxu0
    %v1114 = vunpack.c.l.b16 %v234
    %v1115 = vunpack.c.l.b16 %v235
    %v1116 = vunpack.c.l.b16 %v236
    %v1117 = vunpack.c.l.b16 %v237
    %v1118 = vunpack.c.l.b16 %v238
    %v1119 = vunpack.c.l.b16 %v239
    %v1120 = vunpack.c.l.b16 %v240
    %v1121 = vunpack.c.l.b16 %v241
    %v1122 = vunpack.c.l.b16 %v242
    %v1123 = vunpack.c.l.b16 %v243
    %v1124 = vunpack.c.l.b16 %v244
    %v1125 = vunpack.c.l.b16 %v245
    %v1126 = vunpack.c.l.b16 %v246
    %v1127 = vunpack.c.l.b16 %v247
    %v1128 = vunpack.c.l.b16 %v248
    %v1129 = vunpack.c.l.b16 %v249
    %v1130 = vunpack.c.l.b16 %v250
    %v1131 = vunpack.c.l.b16 %v251
    %v1132 = vunpack.c.l.b16 %v252
    %v1133 = vunpack.c.l.b16 %v253
    %v1134 = vunpack.c.l.b16 %v254
    %v1135 = vunpack.c.l.b16 %v255
    %v1136 = vunpack.c.l.b16 %v256
    %v1137 = vunpack.c.l.b16 %v257
    %v1138 = vunpack.c.l.b16 %v258
    %v1139 = vunpack.c.l.b16 %v259
    %v1140 = vunpack.c.l.b16 %v260
    %v1141 = vunpack.c.l.b16 %v261
    %v1142 = vunpack.c.l.b16 %v262
    %v1143 = vunpack.c.l.b16 %v263
    %v1144 = vunpack.c.l.b16 %v264
    %v1145 = vunpack.c.l.b16 %v265
    %v1146 = vunpack.c.l.b16 %v266
    %v1147 = vunpack.c.l.b16 %v267
    %v1148 = vunpack.c.l.b16 %v268
    %v1149 = vunpack.c.l.b16 %v269
    %v1150 = vunpack.c.l.b16 %v270
    %v1151 = vunpack.c.l.b16 %v271
    %v1152 = vunpack.c.l.b16 %v272
    %v1153 = vunpack.c.l.b16 %v273
    %v1154 = vunpack.c.l.b16 %v274
    %v1155 = vunpack.c.l.b16 %v275
    %v1156 = vunpack.c.l.b16 %v276
    %v1157 = vunpack.c.l.b16 %v277
    %v1158 = vunpack.c.l.b16 %v278
    %v1159 = vunpack.c.l.b16 %v279
    %v1160 = vunpack.c.l.b16 %v280
    %v1161 = vunpack.c.l.b16 %v281
    %v1162 = vunpack.c.l.b16 %v282
    %v1163 = vunpack.c.l.b16 %v283
    %v1164 = vunpack.c.l.b16 %v284
    %v1165 = vunpack.c.l.b16 %v285
    %v1166 = vunpack.c.l.b16 %v286
    %v1167 = vunpack.c.l.b16 %v287
    %v1168 = vunpack.c.l.b16 %v288
    %v1169 = vunpack.c.l.b16 %v289
    %v1170 = vunpack.c.l.b16 %v290
    %v1171 = vunpack.c.l.b16 %v291
    %v1172 = vunpack.c.l.b16 %v292
    %v1173 = vunpack.c.l.b16 %v293
    %v1174 = vunpack.c.l.b16 %v294
    %v1175 = vunpack.c.l.b16 %v295
    %v1176 = vunpack.c.l.b16 %v296
    %v1177 = vunpack.c.l.b16 %v297
    %v1178 = vunpack.c.l.b16 %v298
    %v1179 = vunpack.c.l.b16 %v299
    %v1180 = vunpack.c.l.b16 %v300
    %v1181 = vunpack.c.l.b16 %v301
    %v1182 = vunpack.c.l.b16 %v302
    %v1183 = vunpack.c.l.b16 %v303
    %v1184 = vunpack.c.l.b16 %v304
    %v1185 = vunpack.c.l.b16 %v305
    %v1186 = vunpack.c.l.b16 %v306
    %v1187 = vunpack.c.l.b16 %v307
    %v1188 = vunpack.c.l.b16 %v308
    %v1189 = vunpack.c.l.b16 %v309
    %v1190 = vunpack.c.l.b16 %v310
    %v1191 = vunpack.c.l.b16 %v311
    %v1192 = vunpack.c.l.b16 %v312
    %v1193 = vunpack.c.l.b16 %v313
    %v1194 = vunpack.c.l.b16 %v314
    %v1195 = vunpack.c.l.b16 %v315
    %v1196 = vunpack.c.l.b16 %v316
    %v1197 = vunpack.c.l.b16 %v317
    %v1198 = vunpack.c.l.b16 %v318
    %v1199 = vunpack.c.l.b16 %v319
    %v1200 = vunpack.c.l.b16 %v320
    %v1201 = vunpack.c.l.b16 %v321
    %v1202 = vunpack.c.l.b16 %v322
    %v1203 = vunpack.c.l.b16 %v323
    %v1204 = vunpack.c.l.b16 %v324
    %v1205 = vunpack.c.l.b16 %v325
    %v1206 = vunpack.c.l.b16 %v326
    %v1207 = vunpack.c.l.b16 %v327
    %v1208 = vunpack.c.l.b16 %v328
    %v1209 = vunpack.c.l.b16 %v329
    %v1210 = vunpack.c.l.b16 %v330
    %v1211 = vunpack.c.l.b16 %v331
    %v1212 = vunpack.c.l.b16 %v332
    %v1213 = vunpack.c.l.b16 %v333
    %v1214 = vunpack.c.l.b16 %v334
    %v1215 = vunpack.c.l.b16 %v335
    %v1216 = vunpack.c.l.b16 %v336
    %v1217 = vunpack.c.l.b16 %v337
    %v1218 = vunpack.c.l.b16 %v338
    %v1219 = vunpack.c.l.b16 %v339
    %v1220 = vunpack.c.l.b16 %v340
    %v1221 = vunpack.c.l.b16 %v341
    %v1222 = vunpack.c.l.b16 %v342
    %v1223 = vunpack.c.l.b16 %v343
    %v1224 = vunpack.c.l.b16 %v344
    %v1225 = vunpack.c.l.b16 %v345
    %v1226 = vunpack.c.l.b16 %v346
    %v1227 = vunpack.c.l.b16 %v347
    %v1228 = vunpack.c.l.b16 %v348
    %v1229 = vunpack.c.l.b16 %v349
    %v1230 = vunpack.c.l.b16 %v350
    %v1231 = vunpack.c.l.b16 %v351
    %v1232 = vunpack.c.l.b16 %v352
    %v1233 = vunpack.c.l.b16 %v353
    %v1234 = vunpack.c.l.b16 %v354
    %v1235 = vunpack.c.l.b16 %v355
    %v1236 = vunpack.c.l.b16 %v356
    %v1237 = vunpack.c.l.b16 %v357
    %v1238 = vunpack.c.l.b16 %v358
    %v1239 = vunpack.c.l.b16 %v359
    %v1240 = vunpack.c.l.b16 %v360
    %v1241 = vunpack.c.l.b16 %v361
    %v1242 = vpack.c.b16 %v1115, %v1114
    %v1243 = vpack.c.b16 %v1117, %v1116
    %v1244 = vpack.c.b16 %v1119, %v1118
    %v1245 = vpack.c.b16 %v1121, %v1120
    %v1246 = vpack.c.b16 %v1123, %v1122
    %v1247 = vpack.c.b16 %v1125, %v1124
    %v1248 = vpack.c.b16 %v1127, %v1126
    %v1249 = vpack.c.b16 %v1129, %v1128
    %v1250 = vpack.c.b16 %v1131, %v1130
    %v1251 = vpack.c.b16 %v1133, %v1132
    %v1252 = vpack.c.b16 %v1135, %v1134
    %v1253 = vpack.c.b16 %v1137, %v1136
    %v1254 = vpack.c.b16 %v1139, %v1138
    %v1255 = vpack.c.b16 %v1141, %v1140
    %v1256 = vpack.c.b16 %v1143, %v1142
    %v1257 = vpack.c.b16 %v1145, %v1144
    %v1258 = vpack.c.b16 %v1147, %v1146
    %v1259 = vpack.c.b16 %v1149, %v1148
    %v1260 = vpack.c.b16 %v1151, %v1150
    %v1261 = vpack.c.b16 %v1153, %v1152
    %v1262 = vpack.c.b16 %v1155, %v1154
    %v1263 = vpack.c.b16 %v1157, %v1156
    %v1264 = vpack.c.b16 %v1159, %v1158
    %v1265 = vpack.c.b16 %v1161, %v1160
    %v1266 = vpack.c.b16 %v1163, %v1162
    %v1267 = vpack.c.b16 %v1165, %v1164
    %v1268 = vpack.c.b16 %v1167, %v1166
    %v1269 = vpack.c.b16 %v1169, %v1168
    %v1270 = vpack.c.b16 %v1171, %v1170
    %v1271 = vpack.c.b16 %v1173, %v1172
    %v1272 = vpack.c.b16 %v1175, %v1174
    %v1273 = vpack.c.b16 %v1177, %v1176
    %v1274 = vpack.c.b16 %v1179, %v1178
    %v1275 = vpack.c.b16 %v1181, %v1180
    %v1276 = vpack.c.b16 %v1183, %v1182
    %v1277 = vpack.c.b16 %v1185, %v1184
    %v1278 = vpack.c.b16 %v1187, %v1186
    %v1279 = vpack.c.b16 %v1189, %v1188
    %v1280 = vpack.c.b16 %v1191, %v1190
    %v1281 = vpack.c.b16 %v1193, %v1192
    %v1282 = vpack.c.b16 %v1195, %v1194
    %v1283 = vpack.c.b16 %v1197, %v1196
    %v1284 = vpack.c.b16 %v1199, %v1198
    %v1285 = vpack.c.b16 %v1201, %v1200
    %v1286 = vpack.c.b16 %v1203, %v1202
    %v1287 = vpack.c.b16 %v1205, %v1204
    %v1288 = vpack.c.b16 %v1207, %v1206
    %v1289 = vpack.c.b16 %v1209, %v1208
    %v1290 = vpack.c.b16 %v1211, %v1210
    %v1291 = vpack.c.b16 %v1213, %v1212
    %v1292 = vpack.c.b16 %v1215, %v1214
    %v1293 = vpack.c.b16 %v1217, %v1216
    %v1294 = vpack.c.b16 %v1219, %v1218
    %v1295 = vpack.c.b16 %v1221, %v1220
    %v1296 = vpack.c.b16 %v1223, %v1222
    %v1297 = vpack.c.b16 %v1225, %v1224
    %v1298 = vpack.c.b16 %v1227, %v1226
    %v1299 = vpack.c.b16 %v1229, %v1228
    %v1300 = vpack.c.b16 %v1231, %v1230
    %v1301 = vpack.c.b16 %v1233, %v1232
    %v1302 = vpack.c.b16 %v1235, %v1234
    %v1303 = vpack.c.b16 %v1237, %v1236
    %v1304 = vpack.c.b16 %v1239, %v1238
    %v1305 = vpack.c.b16 %v1241, %v1240
    %1370 = vmatpush.bf16.msra.mxu0 %v1249
    %1371 = vmatpush.bf16.msra.mxu0 %v1248
    %1372 = vmatpush.bf16.msra.mxu0 %v1247
    %1373 = vmatpush.bf16.msra.mxu0 %v1246
    %1374 = vmatpush.bf16.msra.mxu0 %v1245
    %1375 = vmatpush.bf16.msra.mxu0 %v1244
    %1376 = vmatpush.bf16.msra.mxu0 %v1243
    %1377 = vmatpush.bf16.msra.mxu0 %v1242
    %1378 = vmatmul.bf16.gmra.mxu0 %v226
    %v1379 = vpop.f32.mrf.mxu0
    %v1380 = vadd.f32 %v982, %v1379
    %v1381 = vpop.f32.mrf.mxu0
    %v1382 = vadd.f32 %v984, %v1381
    %1383 = vdwg.mxu0
    %1384 = vmatpush.bf16.msra.mxu0 %v1257
    %1385 = vmatpush.bf16.msra.mxu0 %v1256
    %1386 = vmatpush.bf16.msra.mxu0 %v1255
    %1387 = vmatpush.bf16.msra.mxu0 %v1254
    %1388 = vmatpush.bf16.msra.mxu0 %v1253
    %1389 = vmatpush.bf16.msra.mxu0 %v1252
    %1390 = vmatpush.bf16.msra.mxu0 %v1251
    %1391 = vmatpush.bf16.msra.mxu0 %v1250
    %1392 = vmatmul.bf16.gmra.mxu0 %v227
    %v1393 = vpop.f32.mrf.mxu0
    %v1394 = vadd.f32 %v1380, %v1393
    %v1395 = vpop.f32.mrf.mxu0
    %v1396 = vadd.f32 %v1382, %v1395
    %1397 = vdwg.mxu0
    %1398 = vmatpush.bf16.msra.mxu0 %v1265
    %1399 = vmatpush.bf16.msra.mxu0 %v1264
    %1400 = vmatpush.bf16.msra.mxu0 %v1263
    %1401 = vmatpush.bf16.msra.mxu0 %v1262
    %1402 = vmatpush.bf16.msra.mxu0 %v1261
    %1403 = vmatpush.bf16.msra.mxu0 %v1260
    %1404 = vmatpush.bf16.msra.mxu0 %v1259
    %1405 = vmatpush.bf16.msra.mxu0 %v1258
    %1406 = vmatmul.bf16.gmra.mxu0 %v228
    %v1407 = vpop.f32.mrf.mxu0
    %v1408 = vadd.f32 %v1394, %v1407
    %v1409 = vpop.f32.mrf.mxu0
    %v1410 = vadd.f32 %v1396, %v1409
    %1411 = vdwg.mxu0
    %1412 = vmatpush.bf16.msra.mxu0 %v1273
    %1413 = vmatpush.bf16.msra.mxu0 %v1272
    %1414 = vmatpush.bf16.msra.mxu0 %v1271
    %1415 = vmatpush.bf16.msra.mxu0 %v1270
    %1416 = vmatpush.bf16.msra.mxu0 %v1269
    %1417 = vmatpush.bf16.msra.mxu0 %v1268
    %1418 = vmatpush.bf16.msra.mxu0 %v1267
    %1419 = vmatpush.bf16.msra.mxu0 %v1266
    %1420 = vmatmul.bf16.gmra.mxu0 %v229
    %v1421 = vpop.f32.mrf.mxu0
    %v1422 = vadd.f32 %v1408, %v1421
    %v1423 = vpop.f32.mrf.mxu0
    %v1424 = vadd.f32 %v1410, %v1423
    %1425 = vdwg.mxu0
    %1426 = vmatpush.bf16.msra.mxu0 %v1281
    %1427 = vmatpush.bf16.msra.mxu0 %v1280
    %1428 = vmatpush.bf16.msra.mxu0 %v1279
    %1429 = vmatpush.bf16.msra.mxu0 %v1278
    %1430 = vmatpush.bf16.msra.mxu0 %v1277
    %1431 = vmatpush.bf16.msra.mxu0 %v1276
    %1432 = vmatpush.bf16.msra.mxu0 %v1275
    %1433 = vmatpush.bf16.msra.mxu0 %v1274
    %1434 = vmatmul.bf16.gmra.mxu0 %v230
    %v1435 = vpop.f32.mrf.mxu0
    %v1436 = vadd.f32 %v1422, %v1435
    %v1437 = vpop.f32.mrf.mxu0
    %v1438 = vadd.f32 %v1424, %v1437
    %1439 = vdwg.mxu0
    %1440 = vmatpush.bf16.msra.mxu0 %v1289
    %1441 = vmatpush.bf16.msra.mxu0 %v1288
    %1442 = vmatpush.bf16.msra.mxu0 %v1287
    %1443 = vmatpush.bf16.msra.mxu0 %v1286
    %1444 = vmatpush.bf16.msra.mxu0 %v1285
    %1445 = vmatpush.bf16.msra.mxu0 %v1284
    %1446 = vmatpush.bf16.msra.mxu0 %v1283
    %1447 = vmatpush.bf16.msra.mxu0 %v1282
    %1448 = vmatmul.bf16.gmra.mxu0 %v231
    %v1449 = vpop.f32.mrf.mxu0
    %v1450 = vadd.f32 %v1436, %v1449
    %v1451 = vpop.f32.mrf.mxu0
    %v1452 = vadd.f32 %v1438, %v1451
    %1453 = vdwg.mxu0
    %1454 = vmatpush.bf16.msra.mxu0 %v1297
    %1455 = vmatpush.bf16.msra.mxu0 %v1296
    %1456 = vmatpush.bf16.msra.mxu0 %v1295
    %1457 = vmatpush.bf16.msra.mxu0 %v1294
    %1458 = vmatpush.bf16.msra.mxu0 %v1293
    %1459 = vmatpush.bf16.msra.mxu0 %v1292
    %1460 = vmatpush.bf16.msra.mxu0 %v1291
    %1461 = vmatpush.bf16.msra.mxu0 %v1290
    %1462 = vmatmul.bf16.gmra.mxu0 %v232
    %v1463 = vpop.f32.mrf.mxu0
    %v1464 = vadd.f32 %v1450, %v1463
    %v1465 = vpop.f32.mrf.mxu0
    %v1466 = vadd.f32 %v1452, %v1465
    %1467 = vdwg.mxu0
    %1468 = vmatpush.bf16.msra.mxu0 %v1305
    %1469 = vmatpush.bf16.msra.mxu0 %v1304
    %1470 = vmatpush.bf16.msra.mxu0 %v1303
    %1471 = vmatpush.bf16.msra.mxu0 %v1302
    %1472 = vmatpush.bf16.msra.mxu0 %v1301
    %1473 = vmatpush.bf16.msra.mxu0 %v1300
    %1474 = vmatpush.bf16.msra.mxu0 %v1299
    %1475 = vmatpush.bf16.msra.mxu0 %v1298
    %1476 = vmatmul.bf16.gmra.mxu0 %v233
    %v1477 = vpop.f32.mrf.mxu0
    %v1478 = vadd.f32 %v1464, %v1477
    %v1479 = vpop.f32.mrf.mxu0
    %v1480 = vadd.f32 %v1466, %v1479
    %1481 = vdwg.mxu0
    %1482 = vst [vmem:[#allocation7] sm:$0xff] %v1478
    %1483 = vst [vmem:[#allocation7 + $0x8] sm:$0xff] %v1480
    // Predicated region
    $region22: #{_forward.1} parent=1 // pred_check
      _
    $region23: #{_forward.1} parent=1 // pred_check_branch
      %1485 = sbr.rel (0) target = $region25
    $region24: #{_forward.1} parent=1 // pred_region
      %1487 = vsyncadd [#allocation4], 0
      %s1488 = sshll.u32 [#allocation7], 4
      %s1489 = int_to_ptr.vmem [resolvable:$true] %s1488
      %s1490 = sshll.u32 %s3, 4
      %s1491 = int_to_ptr.hbm [resolvable:$true] %s1490
      %1496 = dma.vmem_to_hbm [thread:$0]  %s1489, 256, %s1491, [#allocation4], 128, 128, 8
    $region25: #{_forward.1} parent=1 // pred_fallthru
      _
    // Predicated region
    $region26: #{_forward.1} parent=1 // pred_check
      _
    $region27: #{_forward.1} parent=1 // pred_check_branch
      %1498 = sbr.rel (0) target = $region29
    $region28: #{_forward.1} parent=1 // pred_region
      %1500 = dma.done [#allocation4], 256
    $region29: #{_forward.1} parent=1 // pred_fallthru
      _
    %1501 = vsyncpa [#allocation3], 1
    %1502 = vsyncpa [#allocation6], 1
    %1503 = vsyncpa [#allocation4], 1

</llo_original>
